<compile_context>
chip_gen: v7x
topology: tpu7x:2x2x1
jax: 0.10.0
libtpu: 0.0.40
codegen_flags: <defaults>
</compile_context>

<pallas_src>
import jax
import jax.numpy as jnp
from jax.experimental import pallas as pl
from jax.experimental.pallas import tpu as pltpu


_MAX_TN = 32768            # lane-tile upper bound (multiple of 128)
_FALLBACK_VMEM = 64 << 20  # most conservative physical VMEM (v7x, per TC)


def _vmem_budgets():
    """(tile working-set budget, scoped-VMEM limit) sized to the chip generation."""
    try:
        cap = int(pltpu.get_tpu_info().vmem_capacity_bytes)
    except Exception:
        cap = _FALLBACK_VMEM
    # Double-buffered tile working set, with generous headroom below physical VMEM:
    #   v7x  (64 MiB)  -> 24 MiB tiles, 32 MiB scoped limit
    #   v5e/v6e (128 MiB) -> 48 MiB tiles, 56 MiB scoped limit
    tile_budget = max(16 << 20, min(48 << 20, cap // 2 - (8 << 20)))
    vmem_limit = min(cap - (8 << 20), tile_budget + (8 << 20))
    return tile_budget, vmem_limit


def _block_lane_bytes(rows, itemsize):
    """VMEM bytes per lane column for a (rows, lanes) block, incl. sublane padding.

    Sub-32-bit dtypes pack along sublanes, so the native tile is
    (8 * 4 / itemsize, 128); rows pad up to that granule.
    """
    pad_to = 8 * max(1, 4 // itemsize)
    padded = pad_to * (-(-rows // pad_to))
    return padded * itemsize


def _choose_tn(n, row_bytes, budget, max_lanes):
    """Largest lane tile (multiple of 128, <= max_lanes) fitting the VMEM budget.

    `row_bytes` = sum over all blocks of (padded rows * itemsize) per lane;
    the factor 2 accounts for double buffering of every operand.
    Prefers a tile that divides N exactly (within 2x of the max) so the last
    grid step is never nearly empty.
    """
    tn_max = (budget // (2 * row_bytes)) // 128 * 128
    tn_max = max(128, min(int(tn_max), max_lanes))
    if n <= tn_max:
        return n                      # block == full dim: always legal, no tail
    t = tn_max
    lo = max(128, tn_max // 2)
    while t >= lo:
        if n % t == 0:
            return t                  # exact divisor: no ragged last step
        t -= 128
    return tn_max                      # ragged tail handled by cdiv grid + masking


def _group_all_kernel(xyz_ref, feat_ref, out_ref):
    # xyz_ref:  (1, 3,   tn)  native xyz dtype (wrapper pre-transposed, lane-dense)
    # feat_ref: (1, C,   tn)  native features dtype
    # out_ref:  (1, C+3, tn)  promoted dtype
    out_ref[0, 0:3, :] = xyz_ref[0].astype(out_ref.dtype)   # grouped_xyz channels
    # TODO(synk): if a v7x bundle dump shows this sublane-offset store binding the
    #             vst slot, split into an aligned bulk copy + tiny xyz pass.
    out_ref[0, 3:, :] = feat_ref[0].astype(out_ref.dtype)   # grouped_features (bulk)


def group_all(xyz, new_xyz=None, features=None, use_xyz=True, *, max_lanes=_MAX_TN):
    """Pallas implementation of GroupAll.forward.

    Args:
      xyz:      (B, N, 3) float array.
      new_xyz:  unused (signature parity with the PyTorch module).
      features: optional (B, C, N) float array.
      use_xyz:  whether to prepend the xyz coordinates to the features.
      max_lanes: testing hook to force a smaller lane tile.

    Returns:
      (B, C+3, 1, N) if features is not None and use_xyz,
      (B, C,   1, N) if features is not None and not use_xyz,
      (B, 3,   1, N) if features is None.
    """
    del new_xyz  # unused, signature parity only
    B, N, _ = xyz.shape

    if features is None:
        # The XLA transpose is the only data movement required; a Pallas copy on
        # top would double HBM traffic (review item 5).
        return jnp.swapaxes(xyz, 1, 2)[:, :, None, :]

    if not use_xyz:
        # Pure unsqueeze -- no data movement worth a kernel.
        return features[:, :, None, :]

    C = features.shape[1]
    out_dtype = jnp.result_type(xyz.dtype, features.dtype)   # torch.cat promotion
    xyz_t = jnp.swapaxes(xyz, 1, 2)                           # (B, 3, N), lane-dense

    xyz_item = jnp.dtype(xyz.dtype).itemsize
    feat_item = jnp.dtype(features.dtype).itemsize
    out_item = jnp.dtype(out_dtype).itemsize

    tile_budget, vmem_limit = _vmem_budgets()
    row_bytes = (_block_lane_bytes(3, xyz_item)
                 + _block_lane_bytes(C, feat_item)
                 + _block_lane_bytes(C + 3, out_item))
    tn = _choose_tn(N, row_bytes, tile_budget, max_lanes)

    # Pure copy: bytes read (xyz_t + features) + bytes written (out), zero flops.
    bytes_accessed = B * N * (3 * xyz_item + C * feat_item + (C + 3) * out_item)

    out = pl.pallas_call(
        _group_all_kernel,
        out_shape=jax.ShapeDtypeStruct((B, C + 3, N), out_dtype),
        grid_spec=pltpu.PrefetchScalarGridSpec(
            num_scalar_prefetch=0,
            grid=(B, pl.cdiv(N, tn)),
            in_specs=[
                pl.BlockSpec((1, 3, tn), lambda b, n: (b, 0, n)),
                pl.BlockSpec((1, C, tn), lambda b, n: (b, 0, n)),
            ],
            out_specs=pl.BlockSpec((1, C + 3, tn), lambda b, n: (b, 0, n)),
        ),
        compiler_params=pltpu.CompilerParams(
            dimension_semantics=("parallel", "parallel"),
            vmem_limit_bytes=int(vmem_limit)),
        cost_estimate=pl.CostEstimate(flops=0, transcendentals=0,
                                      bytes_accessed=int(bytes_accessed)),
    )(xyz_t, features)
    return out[:, :, None, :]   # insert the singleton "nsample" axis -> (B, C+3, 1, N)


def _reference_group_all(xyz, features, use_xyz=True):
    grouped_xyz = jnp.transpose(xyz, (0, 2, 1))[:, :, None, :]        # (B, 3, 1, N)
    if features is not None:
        grouped_features = features[:, :, None, :]                    # (B, C, 1, N)
        if use_xyz:
            # jnp.concatenate promotes dtypes like torch.cat does.
            return jnp.concatenate([grouped_xyz, grouped_features], axis=1)
        return grouped_features
    return grouped_xyz


if __name__ == "__main__":
    key = jax.random.PRNGKey(0)
    k1, k2, k3, k4 = jax.random.split(key, 4)

    # Small shapes consistent with the module.
    B, N, C = 2, 256, 4
    xyz = jax.random.normal(k1, (B, N, 3), dtype=jnp.float32)
    features = jax.random.normal(k2, (B, C, N), dtype=jnp.float32)

    # Main path: use_xyz=True with features.
    out = jax.block_until_ready(group_all(xyz, new_xyz=None, features=features, use_xyz=True))
    ref = _reference_group_all(xyz, features, use_xyz=True)
    assert out.shape == (B, C + 3, 1, N), out.shape
    assert out.dtype == ref.dtype, (out.dtype, ref.dtype)
    assert jnp.allclose(out, ref), "mismatch vs reference (features path)"

    # use_xyz=False path (pure reshape).
    out_nf = jax.block_until_ready(group_all(xyz, new_xyz=None, features=features, use_xyz=False))
    ref_nf = _reference_group_all(xyz, features, use_xyz=False)
    assert out_nf.shape == (B, C, 1, N), out_nf.shape
    assert jnp.allclose(out_nf, ref_nf), "mismatch vs reference (use_xyz=False path)"

    # xyz-only path.
    out_xyz = jax.block_until_ready(group_all(xyz, new_xyz=None, features=None))
    ref_xyz = _reference_group_all(xyz, None)
    assert out_xyz.shape == (B, 3, 1, N), out_xyz.shape
    assert jnp.allclose(out_xyz, ref_xyz), "mismatch vs reference (xyz-only path)"

    # Mixed-dtype path (bf16 features, f32 xyz): in-kernel cast, torch.cat promotion.
    feat_bf16 = jax.random.normal(k3, (B, C, N), dtype=jnp.bfloat16)
    out_mx = jax.block_until_ready(group_all(xyz, new_xyz=None, features=feat_bf16, use_xyz=True))
    ref_mx = _reference_group_all(xyz, feat_bf16, use_xyz=True)
    assert out_mx.dtype == ref_mx.dtype, (out_mx.dtype, ref_mx.dtype)
    assert jnp.allclose(out_mx, ref_mx), "mismatch vs reference (mixed-dtype path)"

    # Exercise the tiled / ragged-last-tile path via the max_lanes testing hook
    # (N not a multiple of the tile, last tile only partially valid).
    N2, C2 = 1160, 5
    xyz2 = jax.random.normal(k3, (B, N2, 3), dtype=jnp.float32)
    feat2 = jax.random.normal(k4, (B, C2, N2), dtype=jnp.float32)
    out2 = jax.block_until_ready(
        group_all(xyz2, new_xyz=None, features=feat2, use_xyz=True, max_lanes=512))
    ref2 = _reference_group_all(xyz2, feat2, use_xyz=True)
    assert out2.shape == (B, C2 + 3, 1, N2), out2.shape
    assert jnp.allclose(out2, ref2), "mismatch vs reference (tiled/ragged path)"

    print("KERNEL_OK")
</pallas_src>

<mosaic_0001>
module attributes {stable_mosaic.version = 11 : i64} {
  func.func @_group_all_kernel(%arg0: i32, %arg1: i32, %arg2: memref<1x3x256xf32, #tpu.memory_space<vmem>>, %arg3: memref<1x4x256xf32, #tpu.memory_space<vmem>>, %arg4: memref<1x7x256xf32, #tpu.memory_space<vmem>>) attributes {dimension_semantics = [#tpu.dimension_semantics<parallel>, #tpu.dimension_semantics<parallel>], iteration_bounds = array<i64: 2, 1>, scalar_prefetch = 0 : i64, scratch_operands = 0 : i64, tpu.core_type = #tpu.core_type<tc>, window_params = [{transform_indices = @transform_0, window_bounds = array<i64: 1, 3, 256>}, {transform_indices = @transform_1, window_bounds = array<i64: 1, 4, 256>}, {transform_indices = @transform_2, window_bounds = array<i64: 1, 7, 256>}]} {
    %c0 = arith.constant 0 : index
    %c0_0 = arith.constant 0 : index
    %c0_1 = arith.constant 0 : index
    %0 = vector.load %arg2[%c0, %c0_0, %c0_1] : memref<1x3x256xf32, #tpu.memory_space<vmem>>, vector<1x3x256xf32>
    %1 = vector.shape_cast %0 : vector<1x3x256xf32> to vector<3x256xf32>
    %c0_2 = arith.constant 0 : index
    %c0_3 = arith.constant 0 : index
    %c0_4 = arith.constant 0 : index
    %2 = vector.load %arg4[%c0_2, %c0_3, %c0_4] : memref<1x7x256xf32, #tpu.memory_space<vmem>>, vector<1x3x256xf32>
    %3 = vector.shape_cast %2 : vector<1x3x256xf32> to vector<3x256xf32>
    %4 = vector.shape_cast %1 : vector<3x256xf32> to vector<1x3x256xf32>
    tpu.vector_store %arg4[%c0_2, %c0_3, %c0_4], %4 {strides = array<i32>} : memref<1x7x256xf32, #tpu.memory_space<vmem>>, vector<1x3x256xf32>,
    %c0_5 = arith.constant 0 : index
    %c0_6 = arith.constant 0 : index
    %c0_7 = arith.constant 0 : index
    %5 = vector.load %arg3[%c0_5, %c0_6, %c0_7] : memref<1x4x256xf32, #tpu.memory_space<vmem>>, vector<1x4x256xf32>
    %6 = vector.shape_cast %5 : vector<1x4x256xf32> to vector<4x256xf32>
    %c0_8 = arith.constant 0 : index
    %c3 = arith.constant 3 : index
    %c0_9 = arith.constant 0 : index
    %7 = vector.load %arg4[%c0_8, %c3, %c0_9] : memref<1x7x256xf32, #tpu.memory_space<vmem>>, vector<1x4x256xf32>
    %8 = vector.shape_cast %7 : vector<1x4x256xf32> to vector<4x256xf32>
    %9 = vector.shape_cast %6 : vector<4x256xf32> to vector<1x4x256xf32>
    tpu.vector_store %arg4[%c0_8, %c3, %c0_9], %9 {strides = array<i32>} : memref<1x7x256xf32, #tpu.memory_space<vmem>>, vector<1x4x256xf32>,
    return
  }
  func.func @transform_0(%arg0: i32, %arg1: i32) -> (i32, i32, i32) {
    %c0_i32 = arith.constant 0 : i32
    %c0_i32_0 = arith.constant 0 : i32
    return %arg0, %c0_i32, %arg1 : i32, i32, i32
  }
  func.func @transform_1(%arg0: i32, %arg1: i32) -> (i32, i32, i32) {
    %c0_i32 = arith.constant 0 : i32
    %c0_i32_0 = arith.constant 0 : i32
    return %arg0, %c0_i32, %arg1 : i32, i32, i32
  }
  func.func @transform_2(%arg0: i32, %arg1: i32) -> (i32, i32, i32) {
    %c0_i32 = arith.constant 0 : i32
    %c0_i32_0 = arith.constant 0 : i32
    return %arg0, %c0_i32, %arg1 : i32, i32, i32
  }
}

</mosaic_0001>

<llo_original>
// kernel: tpu_custom_call.1
$region0: #{tpu_custom_call.1}
  #allocation0 [shape = 'u32[]', space=smem, size = 0x4, offset = 0x4, fixed_abs, tag = 'smem constant byte address 0x4 - core index']
  #allocation1 [shape = 'u32[144,128]{1,0:T(1,128)}', space=vmem, size = 0x12000, scoped, tag = 'internal scratch']
  %s0 = inlined_call_operand.vmem [shape: f32[2,3,256], index: 0, kind: input, shape index: {}]
  %s1 = inlined_call_operand.vmem [shape: f32[2,4,256], index: 1, kind: input, shape index: {}]
  %s2 = inlined_call_operand.vmem [shape: f32[2,7,256], index: 2, kind: output, shape index: {}]
  %s3 = sld [smem:[#allocation0]]
  $region41: #{tpu_custom_call.1} parent=0
    _
  %s5 = ssub.s32 1, %s3
  %s6 = scalar_select 0, %s5, %s3
  loop: start=0, step=1, limit=4
  $region2: #{tpu_custom_call.1} parent=0 // loop_pre_header
    _
  $region3: #{tpu_custom_call.1} parent=0 // loop_header
    %s8 = sphi 0, %s12
    %p9 = scmp.ge.s32.totalorder %s8, 4
    %s15 = sphi 0, %s27
    %s16 = sphi 0, %s23
    %s17 = sphi 0, %s15
    %s18 = sphi 0, %s16
    %s19 = sphi 0, %s17
    %s20 = sphi 0, %s18
    %s32 = sphi 0, %s34
    %s35 = sphi 0, %s32
    %s36 = sphi 0, %s35
    %s52 = sphi 0, %s36
    %s60 = sphi 0, %s62
    %s63 = sphi 0, %s60
    %s64 = sphi 0, %s63
    %s80 = sphi 0, %s64
    %s88 = sphi 0, %s90
    %s91 = sphi 0, %s88
    %s92 = sphi 0, %s91
    %s108 = sphi 0, %s92
  $region4: #{tpu_custom_call.1} parent=0 // loop_header_branch
    %11 = sbr.rel (%p9) target = $region8
  $region5: #{tpu_custom_call.1} parent=0 // loop_body
    %s13 = ssub.s32 %s8, 1
    %s14 = ssub.s32 %s8, 2
    %s21 = sadd.s32 1, %s16
    %p22 = scmp.ge.s32.totalorder %s21, 1
    %s23 = scalar_select %p22, 0, %s21
    %s24 = sadd.s32 1, %s15
    %s25 = scalar_select %p22, %s24, %s15
    %p26 = scmp.ge.s32.totalorder %s25, 2
    %s27 = scalar_select %p26, 0, %s25
    %s28 = ssub.s32 %s15, %s27
    %s29 = ssub.s32 %s16, %s23
    %s30 = sor.u32 %s28, %s29
    %p31 = scmp.eq.s32.totalorder %s30, 0
    %s33 = sadd.s32 %s32, 1
    %s34 = scalar_select %p31, %s32, %s33
    %p37 = pneg %p31
    %p38 = scmp.eq.s32.totalorder %s8, 1
    %p39 = por %p37, %p38
    %p40 = scmp.ne.s32.totalorder %s32, %s35
    %p41 = scmp.eq.s32.totalorder %s8, 0
    %p42 = por %p40, %p41
    %p43 = scmp.ne.s32.totalorder %s32, %s35
    %p44 = scmp.eq.s32.totalorder %s13, 1
    %p45 = por %p43, %p44
    %p46 = scmp.ne.s32.totalorder %s35, %s36
    %p47 = scmp.eq.s32.totalorder %s13, 0
    %p48 = por %p46, %p47
    %p49 = scmp.ne.s32.totalorder %s35, %s36
    %p50 = scmp.eq.s32.totalorder %s14, 1
    %p51 = por %p49, %p50
    %p53 = scmp.ne.s32.totalorder %s36, %s52
    %p54 = scmp.eq.s32.totalorder %s14, 0
    %p55 = por %p53, %p54
    %s56 = ssub.s32 %s15, %s27
    %s57 = ssub.s32 %s16, %s23
    %s58 = sor.u32 %s56, %s57
    %p59 = scmp.eq.s32.totalorder %s58, 0
    %s61 = sadd.s32 %s60, 1
    %s62 = scalar_select %p59, %s60, %s61
    %p65 = pneg %p59
    %p66 = scmp.eq.s32.totalorder %s8, 1
    %p67 = por %p65, %p66
    %p68 = scmp.ne.s32.totalorder %s60, %s63
    %p69 = scmp.eq.s32.totalorder %s8, 0
    %p70 = por %p68, %p69
    %p71 = scmp.ne.s32.totalorder %s60, %s63
    %p72 = scmp.eq.s32.totalorder %s13, 1
    %p73 = por %p71, %p72
    %p74 = scmp.ne.s32.totalorder %s63, %s64
    %p75 = scmp.eq.s32.totalorder %s13, 0
    %p76 = por %p74, %p75
    %p77 = scmp.ne.s32.totalorder %s63, %s64
    %p78 = scmp.eq.s32.totalorder %s14, 1
    %p79 = por %p77, %p78
    %p81 = scmp.ne.s32.totalorder %s64, %s80
    %p82 = scmp.eq.s32.totalorder %s14, 0
    %p83 = por %p81, %p82
    %s84 = ssub.s32 %s15, %s27
    %s85 = ssub.s32 %s16, %s23
    %s86 = sor.u32 %s84, %s85
    %p87 = scmp.eq.s32.totalorder %s86, 0
    %s89 = sadd.s32 %s88, 1
    %s90 = scalar_select %p87, %s88, %s89
    %p93 = pneg %p87
    %p94 = scmp.eq.s32.totalorder %s8, 1
    %p95 = por %p93, %p94
    %p96 = scmp.ne.s32.totalorder %s88, %s91
    %p97 = scmp.eq.s32.totalorder %s8, 0
    %p98 = por %p96, %p97
    %p99 = scmp.ne.s32.totalorder %s88, %s91
    %p100 = scmp.eq.s32.totalorder %s13, 1
    %p101 = por %p99, %p100
    %p102 = scmp.ne.s32.totalorder %s91, %s92
    %p103 = scmp.eq.s32.totalorder %s13, 0
    %p104 = por %p102, %p103
    %p105 = scmp.ne.s32.totalorder %s91, %s92
    %p106 = scmp.eq.s32.totalorder %s14, 1
    %p107 = por %p105, %p106
    %p109 = scmp.ne.s32.totalorder %s92, %s108
    %p110 = scmp.eq.s32.totalorder %s14, 0
    %p111 = por %p109, %p110
    %p112 = scmp.le.s32.totalorder 1, %s8
    %p113 = scmp.lt.s32.totalorder %s8, 3
    %p114 = pnand %p112, %p113
    %p115 = pneg %p114
    // Predicated region
    $region9: #{tpu_custom_call.1} parent=5 // pred_check
      _
    $region10: #{tpu_custom_call.1} parent=5 // pred_check_branch
      %117 = sbr.rel (%p114) target = $region12
    $region11: #{tpu_custom_call.1} parent=5 // pred_region
      %s118 = ssub.s32 %s8, 1
    $region12: #{tpu_custom_call.1} parent=5 // pred_fallthru
      _
    %p119 = scmp.lt.s32.totalorder %s8, 2
    // Predicated region
    $region13: #{tpu_custom_call.1} parent=5 // pred_check
      %p120 = pneg %p119
    $region14: #{tpu_custom_call.1} parent=5 // pred_check_branch
      %122 = sbr.rel (%p120) target = $region16
    $region15: #{tpu_custom_call.1} parent=5 // pred_region
      // Predicated region
      $region17: #{tpu_custom_call.1} parent=15 // pred_check
        %p123 = pneg %p42
      $region18: #{tpu_custom_call.1} parent=15 // pred_check_branch
        %125 = sbr.rel (%p123) target = $region20
      $region19: #{tpu_custom_call.1} parent=15 // pred_region
        %s126 = smul.u32 2, %s16
        %p127 = scmp.lt.s32.totalorder %s15, 1
        %s128 = scalar_select %p127, %s15, 1
        %p129 = scmp.lt.s32.totalorder %s126, 1
        %s130 = scalar_select %p129, %s126, 1
        %s131 = smul.addr %s128, 2
        %s132 = sadd.s32 %s130, %s131
        %s133 = smul.addr %s132, 4
        %s134 = scalar_lea.vmem %s0, %s133
        %s135 = smul.u32 2, %s16
      $region20: #{tpu_custom_call.1} parent=15 // pred_fallthru
        _
      // Predicated region
      $region21: #{tpu_custom_call.1} parent=15 // pred_check
        %p136 = pneg %p70
      $region22: #{tpu_custom_call.1} parent=15 // pred_check_branch
        %138 = sbr.rel (%p136) target = $region24
      $region23: #{tpu_custom_call.1} parent=15 // pred_region
        %s139 = smul.u32 2, %s16
        %p140 = scmp.lt.s32.totalorder %s15, 1
        %s141 = scalar_select %p140, %s15, 1
        %p142 = scmp.lt.s32.totalorder %s139, 1
        %s143 = scalar_select %p142, %s139, 1
        %s144 = smul.addr %s141, 2
        %s145 = sadd.s32 %s143, %s144
        %s146 = smul.addr %s145, 4
        %s147 = scalar_lea.vmem %s1, %s146
        %s148 = smul.u32 2, %s16
      $region24: #{tpu_custom_call.1} parent=15 // pred_fallthru
        _
    $region16: #{tpu_custom_call.1} parent=5 // pred_fallthru
      _
    %p149 = scmp.le.s32.totalorder 1, %s8
    %p150 = scmp.lt.s32.totalorder %s8, 3
    %p151 = pnand %p149, %p150
    %p152 = pneg %p151
    // Predicated region
    $region25: #{tpu_custom_call.1} parent=5 // pred_check
      _
    $region26: #{tpu_custom_call.1} parent=5 // pred_check_branch
      %154 = sbr.rel (%p151) target = $region28
    $region27: #{tpu_custom_call.1} parent=5 // pred_region
      %s155 = ssub.s32 %s8, 1
      %s156 = smul.u32 2, %s18
      %p157 = scmp.lt.s32.totalorder %s17, 1
      %s158 = scalar_select %p157, %s17, 1
      %p159 = scmp.lt.s32.totalorder %s156, 1
      %s160 = scalar_select %p159, %s156, 1
      %s161 = smul.addr %s158, 2
      %s162 = sadd.s32 %s160, %s161
      %s163 = smul.addr %s162, 4
      %s164 = scalar_lea.vmem %s0, %s163
      %p165 = pneg %p48
      %p166 = pneg %p45
      %s167 = smul.u32 2, %s18
      %p168 = scmp.lt.s32.totalorder %s17, 1
      %s169 = scalar_select %p168, %s17, 1
      %p170 = scmp.lt.s32.totalorder %s167, 1
      %s171 = scalar_select %p170, %s167, 1
      %s172 = smul.addr %s169, 2
      %s173 = sadd.s32 %s171, %s172
      %s174 = smul.addr %s173, 4
      %s175 = scalar_lea.vmem %s1, %s174
      %p176 = pneg %p76
      %p177 = pneg %p73
      %p178 = pneg %p104
      %p179 = pneg %p101
      %s180 = smul.u32 2, %s18
      %p181 = scmp.lt.s32.totalorder %s17, 1
      %s182 = scalar_select %p181, %s17, 1
      %p183 = scmp.lt.s32.totalorder %s180, 1
      %s184 = scalar_select %p183, %s180, 1
      %s185 = smul.addr %s182, 2
      %s186 = sadd.s32 %s184, %s185
      %s187 = smul.addr %s186, 8
      %s188 = scalar_lea.vmem %s2, %s187
      %s189 = smul.u32 2, %s18
      %p190 = scmp.lt.s32.totalorder %s17, 1
      %s191 = scalar_select %p190, %s17, 1
      %p192 = scmp.lt.s32.totalorder %s189, 1
      %s193 = scalar_select %p192, %s189, 1
      %s194 = smul.addr %s191, 2
      %s195 = sadd.s32 %s193, %s194
      %s196 = smul.addr %s195, 4
      %s197 = scalar_lea.vmem %s0, %s196
      %s198 = smul.u32 2, %s18
      %s199 = smul.u32 2, %s18
      %p200 = scmp.lt.s32.totalorder %s17, 1
      %s201 = scalar_select %p200, %s17, 1
      %p202 = scmp.lt.s32.totalorder %s199, 1
      %s203 = scalar_select %p202, %s199, 1
      %s204 = smul.addr %s201, 2
      %s205 = sadd.s32 %s203, %s204
      %s206 = smul.addr %s205, 4
      %s207 = scalar_lea.vmem %s1, %s206
      %s208 = smul.u32 2, %s18
      %s209 = smul.u32 2, %s18
      %p210 = scmp.lt.s32.totalorder %s17, 1
      %s211 = scalar_select %p210, %s17, 1
      %p212 = scmp.lt.s32.totalorder %s209, 1
      %s213 = scalar_select %p212, %s209, 1
      %s214 = smul.addr %s211, 2
      %s215 = sadd.s32 %s213, %s214
      %s216 = smul.addr %s215, 8
      %s217 = scalar_lea.vmem %s2, %s216
      %s218 = smul.u32 2, %s18
      %v219 = vld [vmem:[%s197] sm:$0x77]
      %v221 = vcombine.high %v219, %v219
      %223 = vst [vmem:[%s217] sm:$0x7] %v219
      %224 = vst [vmem:[%s217 + $0x8] sm:$0x7] %v221
      %v225 = vld [vmem:[%s207] sm:$0xff]
      %v227 = vcombine.high %v225, %v225
      %v228 = vrot.slane %v225, 5
      %v229 = vrot.slane %v227, 5
      %232 = vst [vmem:[%s217] sm:$0x78] %v228
      %233 = vst [vmem:[%s217 + $0x8] sm:$0x78] %v229
      %s234 = smul.u32 2, %s18
      %p235 = scmp.lt.s32.totalorder %s17, 1
      %s236 = scalar_select %p235, %s17, 1
      %p237 = scmp.lt.s32.totalorder %s234, 1
      %s238 = scalar_select %p237, %s234, 1
      %s239 = smul.addr %s236, 2
      %s240 = sadd.s32 %s238, %s239
      %s241 = smul.addr %s240, 8
      %s242 = scalar_lea.vmem %s2, %s241
      // Predicated region
      $region29: #{tpu_custom_call.1} parent=27 // pred_check
        %p243 = pneg %p101
      $region30: #{tpu_custom_call.1} parent=27 // pred_check_branch
        %245 = sbr.rel (%p243) target = $region32
      $region31: #{tpu_custom_call.1} parent=27 // pred_region
        %s246 = smul.u32 2, %s18
      $region32: #{tpu_custom_call.1} parent=27 // pred_fallthru
        _
    $region28: #{tpu_custom_call.1} parent=5 // pred_fallthru
      _
    %p247 = scmp.le.s32.totalorder 2, %s8
    // Predicated region
    $region33: #{tpu_custom_call.1} parent=5 // pred_check
      %p248 = pneg %p247
    $region34: #{tpu_custom_call.1} parent=5 // pred_check_branch
      %250 = sbr.rel (%p248) target = $region36
    $region35: #{tpu_custom_call.1} parent=5 // pred_region
      %s251 = ssub.s32 %s8, 2
      // Predicated region
      $region37: #{tpu_custom_call.1} parent=35 // pred_check
        %p252 = pneg %p107
      $region38: #{tpu_custom_call.1} parent=35 // pred_check_branch
        %254 = sbr.rel (%p252) target = $region40
      $region39: #{tpu_custom_call.1} parent=35 // pred_region
        %s255 = smul.u32 2, %s20
        %p256 = scmp.lt.s32.totalorder %s19, 1
        %s257 = scalar_select %p256, %s19, 1
        %p258 = scmp.lt.s32.totalorder %s255, 1
        %s259 = scalar_select %p258, %s255, 1
        %s260 = smul.addr %s257, 2
        %s261 = sadd.s32 %s259, %s260
        %s262 = smul.addr %s261, 8
        %s263 = scalar_lea.vmem %s2, %s262
      $region40: #{tpu_custom_call.1} parent=35 // pred_fallthru
        _
    $region36: #{tpu_custom_call.1} parent=5 // pred_fallthru
      _
  $region6: #{tpu_custom_call.1} parent=0 // loop_footer
    %s12 = sadd.s32 1, %s8
  $region7: #{tpu_custom_call.1} parent=0 // loop_footer_branch
    %7 = sbr.rel target = $region3
  $region8: #{tpu_custom_call.1} parent=0 // loop_exit
    _

</llo_original>
